<compile_context>
chip_gen: v5e
topology: v5e:2x2
jax: 0.10.0
libtpu: 0.0.40
codegen_flags: <defaults>
</compile_context>

<pallas_src>
import jax
import jax.numpy as jnp
from jax.experimental import pallas as pl
from jax.experimental.pallas import tpu as pltpu


def _copy_kernel(x_ref, o_ref):
    # Pure lane-dense copy of a (tile_rows, num_features) block.
    o_ref[...] = x_ref[...]


def flatten_layer(x: jax.Array, num_features: int) -> jax.Array:
    """Pallas equivalent of FlattenLayer(num_features).forward(x)."""
    total = x.size
    assert total % num_features == 0, "num_features must divide total elements"
    n_rows = total // num_features

    # Free metadata-only reshape in the wrapper (matches torch .view on a
    # contiguous NCHW tensor: both are row-major). The kernel never has to
    # re-tile across lanes/sublanes.
    x2d = jnp.reshape(x, (n_rows, num_features))

    # TODO(synk): in production, return `x2d` directly (or fuse the reshape
    # into the downstream matmul's LHS BlockSpec) and delete this copy kernel;
    # it is kept here only so a Pallas kernel / fusion site exists.

    dtype_bytes = jnp.dtype(x.dtype).itemsize
    # Target ~1 MiB per block -> ~4 MiB with in+out double buffering; safe on
    # v5e (16 MiB scoped default), v6e (32 MiB) and v7x (32 MiB scoped / 64 MiB
    # physical VMEM).
    target_block_bytes = 1 << 20
    rows_per_block = max(1, target_block_bytes // (num_features * dtype_bytes))
    if rows_per_block >= n_rows:
        tile_rows = n_rows  # full-extent block: always satisfies tiling rules
    else:
        tile_rows = max(8, (rows_per_block // 8) * 8)  # sublane-aligned tile

    grid = (pl.cdiv(n_rows, tile_rows),)

    return pl.pallas_call(
        _copy_kernel,
        out_shape=jax.ShapeDtypeStruct((n_rows, num_features), x.dtype),
        grid=grid,
        in_specs=[pl.BlockSpec((tile_rows, num_features), lambda i: (i, 0))],
        out_specs=pl.BlockSpec((tile_rows, num_features), lambda i: (i, 0)),
        compiler_params=pltpu.CompilerParams(
            # Row axis is embarrassingly parallel: lets v7x shard the copy
            # across both TensorCores; no effect on single-TC chips.
            dimension_semantics=("parallel",),
            # Explicit limit so the same tile choice is valid on every
            # generation (v5e's default scoped VMEM is only 16 MiB).
            vmem_limit_bytes=16 << 20,
        ),
    )(x2d)


if __name__ == "__main__":
    key = jax.random.PRNGKey(0)
    # NCHW input, e.g. the pooled feature map right before flatten.
    N, C, H, W = 2, 4, 16, 16
    num_features = C * H * W  # 1024 (multiple of 128 -> unmasked lane-dense vst)

    x = jax.random.normal(key, (N, C, H, W), dtype=jnp.float32)

    out = flatten_layer(x, num_features)
    out = jax.block_until_ready(out)

    # Reference: PyTorch x.view(-1, num_features) == row-major reshape.
    ref = x.reshape(-1, num_features)
    assert out.shape == (N, num_features), out.shape
    assert out.dtype == x.dtype
    assert jnp.array_equal(out, ref), "flatten mismatch vs reference reshape"

    print("KERNEL_OK")
</pallas_src>

<mosaic_0001>
module attributes {stable_mosaic.version = 11 : i64} {
  func.func @_copy_kernel(%arg0: i32, %arg1: memref<2x1024xf32, #tpu.memory_space<vmem>>, %arg2: memref<2x1024xf32, #tpu.memory_space<vmem>>) attributes {dimension_semantics = [#tpu.dimension_semantics<parallel>], iteration_bounds = array<i64: 1>, scalar_prefetch = 0 : i64, scratch_operands = 0 : i64, tpu.core_type = #tpu.core_type<tc>, window_params = [{transform_indices = @transform_0, window_bounds = array<i64: 2, 1024>}, {transform_indices = @transform_1, window_bounds = array<i64: 2, 1024>}]} {
    %c0 = arith.constant 0 : index
    %c0_0 = arith.constant 0 : index
    %0 = vector.load %arg1[%c0, %c0_0] : memref<2x1024xf32, #tpu.memory_space<vmem>>, vector<2x1024xf32>
    %c0_1 = arith.constant 0 : index
    %c0_2 = arith.constant 0 : index
    %1 = vector.load %arg2[%c0_1, %c0_2] : memref<2x1024xf32, #tpu.memory_space<vmem>>, vector<2x1024xf32>
    tpu.vector_store %arg2[%c0_1, %c0_2], %0 {strides = array<i32>} : memref<2x1024xf32, #tpu.memory_space<vmem>>, vector<2x1024xf32>,
    return
  }
  func.func @transform_0(%arg0: i32) -> (i32, i32) {
    %c0_i32 = arith.constant 0 : i32
    %c0_i32_0 = arith.constant 0 : i32
    return %arg0, %c0_i32 : i32, i32
  }
  func.func @transform_1(%arg0: i32) -> (i32, i32) {
    %c0_i32 = arith.constant 0 : i32
    %c0_i32_0 = arith.constant 0 : i32
    return %arg0, %c0_i32 : i32, i32
  }
}

</mosaic_0001>

<llo_original>
// kernel: tpu_custom_call.1
$region0: #{tpu_custom_call.1}
  #allocation0 [shape = 'u32[]', space=smem, size = 0x4, offset = 0x4, fixed_abs, tag = 'smem constant byte address 0x4 - core index']
  #allocation1 [shape = 'u32[72,128]{1,0:T(1,128)}', space=vmem, size = 0x9000, scoped, tag = 'internal scratch']
  %s0 = inlined_call_operand.hbm [shape: f32[2,1024], index: 0, kind: input, shape index: {}]
  %s1 = inlined_call_operand.hbm [shape: f32[2,1024], index: 1, kind: output, shape index: {}]
  %s2 = sld [smem:[#allocation0]]
  $region18: #{tpu_custom_call.1} parent=0
    _
  %s4 = ssub.s32 1, %s2
  %s5 = scalar_select 0, %s4, %s2
  $region1: #{tpu_custom_call.1} parent=0
    #allocation2 [shape = 'u8[8192]{0}', space=vmem, size = 0x2000, scoped, tag = 'input window, operand 0, single buffered']
    #allocation3 [shape = 's32[1]{0}', space=sflag, size = 0x4, scoped, tag = 'scoped memory for tpu_custom_call.1']
    #allocation4 [shape = 's32[1]{0}', space=sflag, size = 0x4, scoped, tag = 'scoped memory for tpu_custom_call.1']
    #allocation5 [shape = 'u8[8192]{0}', space=vmem, size = 0x2000, scoped, tag = 'output window, operand 0, single buffered']
    %6 = vsyncpa [#allocation3], 0
    %7 = vsyncpa [#allocation4], 0
    // Predicated region
    $region2: #{tpu_custom_call.1} parent=1 // pred_check
      _
    $region3: #{tpu_custom_call.1} parent=1 // pred_check_branch
      %9 = sbr.rel (0) target = $region5
    $region4: #{tpu_custom_call.1} parent=1 // pred_region
      %11 = vsyncadd [#allocation3], 0
      %s13 = sshll.u32 %s0, 4
      %s14 = int_to_ptr.hbm [resolvable:$true] %s13
      %s15 = sshll.u32 [#allocation2], 4
      %s16 = int_to_ptr.vmem [resolvable:$true] %s15
      %18 = dma.hbm_to_vmem [thread:$0]  %s14, 256, %s16, [#allocation3]
    $region5: #{tpu_custom_call.1} parent=1 // pred_fallthru
      _
    // Predicated region
    $region6: #{tpu_custom_call.1} parent=1 // pred_check
      _
    $region7: #{tpu_custom_call.1} parent=1 // pred_check_branch
      %20 = sbr.rel (0) target = $region9
    $region8: #{tpu_custom_call.1} parent=1 // pred_region
      %22 = dma.done [#allocation3], 256
    $region9: #{tpu_custom_call.1} parent=1 // pred_fallthru
      _
    %v23 = vld [vmem:[#allocation2] sm:$0xff]
    %v24 = vld [vmem:[#allocation2 + $0x8] sm:$0xff]
    %25 = vst [vmem:[#allocation5] sm:$0xff] %v23
    %26 = vst [vmem:[#allocation5 + $0x8] sm:$0xff] %v24
    // Predicated region
    $region10: #{tpu_custom_call.1} parent=1 // pred_check
      _
    $region11: #{tpu_custom_call.1} parent=1 // pred_check_branch
      %28 = sbr.rel (0) target = $region13
    $region12: #{tpu_custom_call.1} parent=1 // pred_region
      %30 = vsyncadd [#allocation4], 0
      %s32 = sshll.u32 [#allocation5], 4
      %s33 = int_to_ptr.vmem [resolvable:$true] %s32
      %s34 = sshll.u32 %s1, 4
      %s35 = int_to_ptr.hbm [resolvable:$true] %s34
      %37 = dma.vmem_to_hbm [thread:$0]  %s33, 256, %s35, [#allocation4]
    $region13: #{tpu_custom_call.1} parent=1 // pred_fallthru
      _
    // Predicated region
    $region14: #{tpu_custom_call.1} parent=1 // pred_check
      _
    $region15: #{tpu_custom_call.1} parent=1 // pred_check_branch
      %39 = sbr.rel (0) target = $region17
    $region16: #{tpu_custom_call.1} parent=1 // pred_region
      %41 = dma.done [#allocation4], 256
    $region17: #{tpu_custom_call.1} parent=1 // pred_fallthru
      _
    %42 = vsyncpa [#allocation3], 1
    %43 = vsyncpa [#allocation4], 1

</llo_original>
